<compile_context>
chip_gen: v7x
topology: tpu7x:2x2x1
jax: 0.10.0
libtpu: 0.0.40
codegen_flags: <defaults>
</compile_context>

<pallas_src>
import functools

import jax
import jax.numpy as jnp
import numpy as np
from jax.experimental import pallas as pl
from jax.experimental.pallas import tpu as pltpu


# ----------------------------------------------------------------------------
# Helpers
# ----------------------------------------------------------------------------
def _round_up(x, m):
    return ((x + m - 1) // m) * m


def _pad_to(a, shape):
    pads = [(0, s - d) for d, s in zip(a.shape, shape)]
    return jnp.pad(a, pads)


# ----------------------------------------------------------------------------
# Fused kernel: per grid step (one time chunk of t_chunk steps):
#   1) x_proj = x_chunk @ Win^T + (b_in + b_hh)      (one MXU matmul, staged
#      into the activity output block, which serves as scratch)
#   2) t_chunk unrolled recurrence steps, hidden state carried in VMEM scratch
#   3) out_chunk = act_chunk @ Wfc^T + b_fc          (one MXU matmul)
# ----------------------------------------------------------------------------
def _make_fused_kernel(alpha, oneminusalpha, gain, t_chunk, Bp):
    def kernel(x_ref, w_in_t_ref, b_ih_ref, w_hh_t_ref, w_fc_t_ref, b_fc_ref,
               out_ref, act_ref, h_scratch):
        @pl.when(pl.program_id(0) == 0)
        def _():
            # init_hidden -> zeros; (1,H) broadcast vs (B,H) zeros identical.
            h_scratch[...] = jnp.zeros_like(h_scratch)

        # --- 1) input projection for the whole chunk (tall MXU matmul). -----
        # Staged into act_ref; each row slab is overwritten with h below.
        act_ref[...] = (
            jnp.dot(x_ref[...], w_in_t_ref[...],
                    preferred_element_type=jnp.float32)
            + b_ih_ref[...]
        )

        w_hh_t = w_hh_t_ref[...]          # loaded once per chunk

        # --- 2) sequential recurrence (fully unrolled, static slices). ------
        h = h_scratch[...]
        for i in range(t_chunk):
            rows = pl.ds(i * Bp, Bp)      # static, sublane-aligned slice
            pre = (
                jnp.dot(h, w_hh_t, preferred_element_type=jnp.float32)
                + act_ref[rows, :]        # x@Win^T + b_in + b_hh (staged above)
            )
            if gain != 1.0:
                pre = gain * pre
            s = jax.nn.sigmoid(pre)       # EUP path, f32
            if oneminusalpha == 0.0:      # dt=None specialization: no dead mul
                h = s if alpha == 1.0 else alpha * s
            else:
                h = h * oneminusalpha + alpha * s
            act_ref[rows, :] = h
        h_scratch[...] = h

        # --- 3) fc projection for the whole chunk (tall MXU matmul). --------
        out_ref[...] = (
            jnp.dot(act_ref[...], w_fc_t_ref[...],
                    preferred_element_type=jnp.float32)
            + b_fc_ref[...]
        )

    return kernel


# ----------------------------------------------------------------------------
# Wrapper: pad -> fused recurrence kernel -> slice.
# ----------------------------------------------------------------------------
@functools.partial(jax.jit, static_argnames=("dt", "sigma_gain", "t_chunk"))
def rnn_net_forward(x, params, *, dt=None, sigma_gain=1.0, t_chunk=8):
    """Pallas implementation of RNNNet.forward.

    Args:
      x: (seq_len, batch, input_size) float32
      params: PyTorch-convention weights:
        w_in (H, I), b_in (H,), w_hh (H, H), b_hh (H,), w_fc (O, H), b_fc (O,)
    Returns:
      (out, rnn_activity): (seq, B, O), (seq, B, H)
    """
    seq_len, batch, input_size = x.shape
    hidden_size = params["w_in"].shape[0]
    output_size = params["w_fc"].shape[0]

    tau = 100.0
    alpha = 1.0 if dt is None else dt / tau
    oneminusalpha = 1.0 - alpha
    gain = float(sigma_gain)

    # --- padded, lane/sublane-dense sizes -----------------------------------
    Bp = _round_up(batch, 8)
    Ip = _round_up(input_size, 128)
    Hp = _round_up(hidden_size, 128)
    Op = _round_up(output_size, 128)
    t_chunk = max(1, min(int(t_chunk), seq_len))
    Sp = _round_up(seq_len, t_chunk)

    # --- pad + pre-transpose weights; fold the two recurrence biases --------
    f32 = jnp.float32
    x_p = _pad_to(x.astype(f32), (Sp, Bp, Ip))
    w_in_t_p = _pad_to(params["w_in"].T.astype(f32), (Ip, Hp))
    w_hh_t_p = _pad_to(params["w_hh"].T.astype(f32), (Hp, Hp))
    w_fc_t_p = _pad_to(params["w_fc"].T.astype(f32), (Hp, Op))
    b_ih_p = _pad_to(
        (params["b_in"] + params["b_hh"]).reshape(1, hidden_size).astype(f32),
        (1, Hp),
    )
    b_fc_p = _pad_to(params["b_fc"].reshape(1, output_size).astype(f32), (1, Op))

    # Flatten (time, batch) -> rows so the kernel works on dense 2-D tiles.
    x2d = x_p.reshape(Sp * Bp, Ip)       # free XLA reshape

    kernel = _make_fused_kernel(alpha, oneminusalpha, gain, t_chunk, Bp)
    rows_per_chunk = t_chunk * Bp

    out2d, act2d = pl.pallas_call(
        kernel,
        out_shape=(
            jax.ShapeDtypeStruct((Sp * Bp, Op), f32),
            jax.ShapeDtypeStruct((Sp * Bp, Hp), f32),
        ),
        grid_spec=pltpu.PrefetchScalarGridSpec(
            num_scalar_prefetch=0,
            grid=(Sp // t_chunk,),
            in_specs=[
                pl.BlockSpec((rows_per_chunk, Ip), lambda t: (t, 0)),
                pl.BlockSpec((Ip, Hp), lambda t: (0, 0)),
                pl.BlockSpec((1, Hp), lambda t: (0, 0)),
                pl.BlockSpec((Hp, Hp), lambda t: (0, 0)),
                pl.BlockSpec((Hp, Op), lambda t: (0, 0)),
                pl.BlockSpec((1, Op), lambda t: (0, 0)),
            ],
            out_specs=[
                pl.BlockSpec((rows_per_chunk, Op), lambda t: (t, 0)),
                pl.BlockSpec((rows_per_chunk, Hp), lambda t: (t, 0)),
            ],
            scratch_shapes=[pltpu.VMEM((Bp, Hp), f32)],
        ),
        compiler_params=pltpu.CompilerParams(
            dimension_semantics=("arbitrary",),  # true sequential recurrence
        ),
    )(x2d, w_in_t_p, b_ih_p, w_hh_t_p, w_fc_t_p, b_fc_p)

    # --- strip padding -------------------------------------------------------
    out = out2d.reshape(Sp, Bp, Op)[:seq_len, :batch, :output_size]
    rnn_activity = act2d.reshape(Sp, Bp, Hp)[:seq_len, :batch, :hidden_size]
    return out, rnn_activity


# ----------------------------------------------------------------------------
# Pure-JAX reference mirroring the PyTorch module exactly.
# ----------------------------------------------------------------------------
def _reference_forward(x, params, *, dt=None, sigma_gain=1.0):
    tau = 100.0
    alpha = 1.0 if dt is None else dt / tau
    oneminusalpha = 1.0 - alpha
    seq_len, batch, _ = x.shape
    hidden_size = params["w_in"].shape[0]

    def linear(inp, w, b):
        return inp @ w.T + b

    hidden = jnp.zeros((1, hidden_size), jnp.float32)  # init_hidden(batch=1)
    acts = []
    for i in range(seq_len):
        pre = linear(hidden, params["w_hh"], params["b_hh"]) + \
              linear(x[i], params["w_in"], params["b_in"])
        hidden = hidden * oneminusalpha + alpha * jax.nn.sigmoid(sigma_gain * pre)
        acts.append(hidden)
    rnn_activity = jnp.stack(acts, axis=0)
    out = linear(rnn_activity, params["w_fc"], params["b_fc"])
    return out, rnn_activity


if __name__ == "__main__":
    # x: (seq_len, batch, input_size) -- time-major RNN input as in the module.
    seq_len, batch, input_size, hidden_size, output_size = 8, 2, 4, 32, 2

    key = jax.random.PRNGKey(0)
    kx, k1, k2, k3, k4, k5, k6 = jax.random.split(key, 7)

    x = jax.random.normal(kx, (seq_len, batch, input_size), dtype=jnp.float32)

    # Deterministic synthetic parameters (PyTorch nn.Linear convention: (out, in)).
    params = {
        "w_in": 0.3 * jax.random.normal(k1, (hidden_size, input_size), jnp.float32),
        "b_in": 0.1 * jax.random.normal(k2, (hidden_size,), jnp.float32),
        "w_hh": 0.3 * jax.random.normal(k3, (hidden_size, hidden_size), jnp.float32),
        "b_hh": 0.1 * jax.random.normal(k4, (hidden_size,), jnp.float32),
        "w_fc": 0.3 * jax.random.normal(k5, (output_size, hidden_size), jnp.float32),
        "b_fc": 0.1 * jax.random.normal(k6, (output_size,), jnp.float32),
    }

    out, act = rnn_net_forward(x, params)
    out = jax.block_until_ready(out)
    act = jax.block_until_ready(act)

    ref_out, ref_act = _reference_forward(x, params)
    assert out.shape == ref_out.shape and act.shape == ref_act.shape
    assert np.allclose(np.asarray(out), np.asarray(ref_out), atol=1e-5, rtol=1e-5)
    assert np.allclose(np.asarray(act), np.asarray(ref_act), atol=1e-5, rtol=1e-5)

    print("KERNEL_OK")
</pallas_src>

<mosaic_0001>
module attributes {stable_mosaic.version = 11 : i64} {
  func.func @kernel(%arg0: i32, %arg1: memref<64x128xf32, #tpu.memory_space<vmem>>, %arg2: memref<128x128xf32, #tpu.memory_space<vmem>>, %arg3: memref<1x128xf32, #tpu.memory_space<vmem>>, %arg4: memref<128x128xf32, #tpu.memory_space<vmem>>, %arg5: memref<128x128xf32, #tpu.memory_space<vmem>>, %arg6: memref<1x128xf32, #tpu.memory_space<vmem>>, %arg7: memref<64x128xf32, #tpu.memory_space<vmem>>, %arg8: memref<64x128xf32, #tpu.memory_space<vmem>>, %arg9: memref<8x128xf32, #tpu.memory_space<vmem>>) attributes {dimension_semantics = [#tpu.dimension_semantics<arbitrary>], iteration_bounds = array<i64: 1>, scalar_prefetch = 0 : i64, scratch_operands = 1 : i64, tpu.core_type = #tpu.core_type<tc>, window_params = [{transform_indices = @transform_0, window_bounds = array<i64: 64, 128>}, {pipeline_mode = #tpu.pipeline_mode<synchronous>, transform_indices = @transform_1, window_bounds = array<i64: 128, 128>}, {pipeline_mode = #tpu.pipeline_mode<synchronous>, transform_indices = @transform_2, window_bounds = array<i64: 1, 128>}, {pipeline_mode = #tpu.pipeline_mode<synchronous>, transform_indices = @transform_3, window_bounds = array<i64: 128, 128>}, {pipeline_mode = #tpu.pipeline_mode<synchronous>, transform_indices = @transform_4, window_bounds = array<i64: 128, 128>}, {pipeline_mode = #tpu.pipeline_mode<synchronous>, transform_indices = @transform_5, window_bounds = array<i64: 1, 128>}, {transform_indices = @transform_6, window_bounds = array<i64: 64, 128>}, {transform_indices = @transform_7, window_bounds = array<i64: 64, 128>}]} {
    %c0_i32 = arith.constant 0 : i32
    %0 = arith.cmpi eq, %arg0, %c0_i32 : i32
    %1 = arith.extui %0 : i1 to i32
    %c0_i32_0 = arith.constant 0 : i32
    %2 = arith.cmpi ne, %1, %c0_i32_0 : i32
    scf.if %2 {
      %cst_64 = arith.constant 0.000000e+00 : f32
      %92 = vector.broadcast %cst_64 : f32 to vector<8x128xf32>
      %c0_65 = arith.constant 0 : index
      %c0_66 = arith.constant 0 : index
      %93 = vector.load %arg9[%c0_65, %c0_66] : memref<8x128xf32, #tpu.memory_space<vmem>>, vector<8x128xf32>
      tpu.vector_store %arg9[%c0_65, %c0_66], %92 {strides = array<i32>} : memref<8x128xf32, #tpu.memory_space<vmem>>, vector<8x128xf32>,
    } else {
    }
    %c0 = arith.constant 0 : index
    %c0_1 = arith.constant 0 : index
    %3 = vector.load %arg1[%c0, %c0_1] : memref<64x128xf32, #tpu.memory_space<vmem>>, vector<64x128xf32>
    %c0_2 = arith.constant 0 : index
    %c0_3 = arith.constant 0 : index
    %4 = vector.load %arg2[%c0_2, %c0_3] : memref<128x128xf32, #tpu.memory_space<vmem>>, vector<128x128xf32>
    %cst = arith.constant dense<0.000000e+00> : vector<64x128xf32>
    %5 = tpu.matmul %3, %4, %cst {dimension_numbers = #tpu.dot_dimension_numbers<[1], [0], [0], [1], [0, 0, 1, 1], [], []>} : vector<64x128xf32>, vector<128x128xf32>, vector<64x128xf32> -> vector<64x128xf32>
    %c0_4 = arith.constant 0 : index
    %c0_5 = arith.constant 0 : index
    %6 = vector.load %arg3[%c0_4, %c0_5] : memref<1x128xf32, #tpu.memory_space<vmem>>, vector<1x128xf32>
    %7 = vector.broadcast %6 : vector<1x128xf32> to vector<64x128xf32>
    %8 = arith.addf %5, %7 : vector<64x128xf32>
    %c0_6 = arith.constant 0 : index
    %c0_7 = arith.constant 0 : index
    %9 = vector.load %arg8[%c0_6, %c0_7] : memref<64x128xf32, #tpu.memory_space<vmem>>, vector<64x128xf32>
    tpu.vector_store %arg8[%c0_6, %c0_7], %8 {strides = array<i32>} : memref<64x128xf32, #tpu.memory_space<vmem>>, vector<64x128xf32>,
    %c0_8 = arith.constant 0 : index
    %c0_9 = arith.constant 0 : index
    %10 = vector.load %arg4[%c0_8, %c0_9] : memref<128x128xf32, #tpu.memory_space<vmem>>, vector<128x128xf32>
    %c0_10 = arith.constant 0 : index
    %c0_11 = arith.constant 0 : index
    %11 = vector.load %arg9[%c0_10, %c0_11] : memref<8x128xf32, #tpu.memory_space<vmem>>, vector<8x128xf32>
    %cst_12 = arith.constant dense<0.000000e+00> : vector<8x128xf32>
    %12 = tpu.matmul %11, %10, %cst_12 {dimension_numbers = #tpu.dot_dimension_numbers<[1], [0], [0], [1], [0, 0, 1, 1], [], []>} : vector<8x128xf32>, vector<128x128xf32>, vector<8x128xf32> -> vector<8x128xf32>
    %c0_13 = arith.constant 0 : index
    %c0_14 = arith.constant 0 : index
    %13 = vector.load %arg8[%c0_13, %c0_14] : memref<64x128xf32, #tpu.memory_space<vmem>>, vector<8x128xf32>
    %14 = arith.addf %12, %13 : vector<8x128xf32>
    %15 = arith.negf %14 : vector<8x128xf32>
    %16 = math.exp %15 : vector<8x128xf32>
    %cst_15 = arith.constant 1.000000e+00 : f32
    %17 = vector.broadcast %cst_15 : f32 to vector<8x128xf32>
    %18 = arith.addf %17, %16 : vector<8x128xf32>
    %19 = arith.divf %17, %18 : vector<8x128xf32>
    %c0_16 = arith.constant 0 : index
    %c0_17 = arith.constant 0 : index
    %20 = vector.load %arg8[%c0_16, %c0_17] : memref<64x128xf32, #tpu.memory_space<vmem>>, vector<8x128xf32>
    tpu.vector_store %arg8[%c0_16, %c0_17], %19 {strides = array<i32>} : memref<64x128xf32, #tpu.memory_space<vmem>>, vector<8x128xf32>,
    %cst_18 = arith.constant dense<0.000000e+00> : vector<8x128xf32>
    %21 = tpu.matmul %19, %10, %cst_18 {dimension_numbers = #tpu.dot_dimension_numbers<[1], [0], [0], [1], [0, 0, 1, 1], [], []>} : vector<8x128xf32>, vector<128x128xf32>, vector<8x128xf32> -> vector<8x128xf32>
    %c8 = arith.constant 8 : index
    %c0_19 = arith.constant 0 : index
    %22 = vector.load %arg8[%c8, %c0_19] : memref<64x128xf32, #tpu.memory_space<vmem>>, vector<8x128xf32>
    %23 = arith.addf %21, %22 : vector<8x128xf32>
    %24 = arith.negf %23 : vector<8x128xf32>
    %25 = math.exp %24 : vector<8x128xf32>
    %cst_20 = arith.constant 1.000000e+00 : f32
    %26 = vector.broadcast %cst_20 : f32 to vector<8x128xf32>
    %27 = arith.addf %26, %25 : vector<8x128xf32>
    %28 = arith.divf %26, %27 : vector<8x128xf32>
    %c8_21 = arith.constant 8 : index
    %c0_22 = arith.constant 0 : index
    %29 = vector.load %arg8[%c8_21, %c0_22] : memref<64x128xf32, #tpu.memory_space<vmem>>, vector<8x128xf32>
    tpu.vector_store %arg8[%c8_21, %c0_22], %28 {strides = array<i32>} : memref<64x128xf32, #tpu.memory_space<vmem>>, vector<8x128xf32>,
    %cst_23 = arith.constant dense<0.000000e+00> : vector<8x128xf32>
    %30 = tpu.matmul %28, %10, %cst_23 {dimension_numbers = #tpu.dot_dimension_numbers<[1], [0], [0], [1], [0, 0, 1, 1], [], []>} : vector<8x128xf32>, vector<128x128xf32>, vector<8x128xf32> -> vector<8x128xf32>
    %c16 = arith.constant 16 : index
    %c0_24 = arith.constant 0 : index
    %31 = vector.load %arg8[%c16, %c0_24] : memref<64x128xf32, #tpu.memory_space<vmem>>, vector<8x128xf32>
    %32 = arith.addf %30, %31 : vector<8x128xf32>
    %33 = arith.negf %32 : vector<8x128xf32>
    %34 = math.exp %33 : vector<8x128xf32>
    %cst_25 = arith.constant 1.000000e+00 : f32
    %35 = vector.broadcast %cst_25 : f32 to vector<8x128xf32>
    %36 = arith.addf %35, %34 : vector<8x128xf32>
    %37 = arith.divf %35, %36 : vector<8x128xf32>
    %c16_26 = arith.constant 16 : index
    %c0_27 = arith.constant 0 : index
    %38 = vector.load %arg8[%c16_26, %c0_27] : memref<64x128xf32, #tpu.memory_space<vmem>>, vector<8x128xf32>
    tpu.vector_store %arg8[%c16_26, %c0_27], %37 {strides = array<i32>} : memref<64x128xf32, #tpu.memory_space<vmem>>, vector<8x128xf32>,
    %cst_28 = arith.constant dense<0.000000e+00> : vector<8x128xf32>
    %39 = tpu.matmul %37, %10, %cst_28 {dimension_numbers = #tpu.dot_dimension_numbers<[1], [0], [0], [1], [0, 0, 1, 1], [], []>} : vector<8x128xf32>, vector<128x128xf32>, vector<8x128xf32> -> vector<8x128xf32>
    %c24 = arith.constant 24 : index
    %c0_29 = arith.constant 0 : index
    %40 = vector.load %arg8[%c24, %c0_29] : memref<64x128xf32, #tpu.memory_space<vmem>>, vector<8x128xf32>
    %41 = arith.addf %39, %40 : vector<8x128xf32>
    %42 = arith.negf %41 : vector<8x128xf32>
    %43 = math.exp %42 : vector<8x128xf32>
    %cst_30 = arith.constant 1.000000e+00 : f32
    %44 = vector.broadcast %cst_30 : f32 to vector<8x128xf32>
    %45 = arith.addf %44, %43 : vector<8x128xf32>
    %46 = arith.divf %44, %45 : vector<8x128xf32>
    %c24_31 = arith.constant 24 : index
    %c0_32 = arith.constant 0 : index
    %47 = vector.load %arg8[%c24_31, %c0_32] : memref<64x128xf32, #tpu.memory_space<vmem>>, vector<8x128xf32>
    tpu.vector_store %arg8[%c24_31, %c0_32], %46 {strides = array<i32>} : memref<64x128xf32, #tpu.memory_space<vmem>>, vector<8x128xf32>,
    %cst_33 = arith.constant dense<0.000000e+00> : vector<8x128xf32>
    %48 = tpu.matmul %46, %10, %cst_33 {dimension_numbers = #tpu.dot_dimension_numbers<[1], [0], [0], [1], [0, 0, 1, 1], [], []>} : vector<8x128xf32>, vector<128x128xf32>, vector<8x128xf32> -> vector<8x128xf32>
    %c32 = arith.constant 32 : index
    %c0_34 = arith.constant 0 : index
    %49 = vector.load %arg8[%c32, %c0_34] : memref<64x128xf32, #tpu.memory_space<vmem>>, vector<8x128xf32>
    %50 = arith.addf %48, %49 : vector<8x128xf32>
    %51 = arith.negf %50 : vector<8x128xf32>
    %52 = math.exp %51 : vector<8x128xf32>
    %cst_35 = arith.constant 1.000000e+00 : f32
    %53 = vector.broadcast %cst_35 : f32 to vector<8x128xf32>
    %54 = arith.addf %53, %52 : vector<8x128xf32>
    %55 = arith.divf %53, %54 : vector<8x128xf32>
    %c32_36 = arith.constant 32 : index
    %c0_37 = arith.constant 0 : index
    %56 = vector.load %arg8[%c32_36, %c0_37] : memref<64x128xf32, #tpu.memory_space<vmem>>, vector<8x128xf32>
    tpu.vector_store %arg8[%c32_36, %c0_37], %55 {strides = array<i32>} : memref<64x128xf32, #tpu.memory_space<vmem>>, vector<8x128xf32>,
    %cst_38 = arith.constant dense<0.000000e+00> : vector<8x128xf32>
    %57 = tpu.matmul %55, %10, %cst_38 {dimension_numbers = #tpu.dot_dimension_numbers<[1], [0], [0], [1], [0, 0, 1, 1], [], []>} : vector<8x128xf32>, vector<128x128xf32>, vector<8x128xf32> -> vector<8x128xf32>
    %c40 = arith.constant 40 : index
    %c0_39 = arith.constant 0 : index
    %58 = vector.load %arg8[%c40, %c0_39] : memref<64x128xf32, #tpu.memory_space<vmem>>, vector<8x128xf32>
    %59 = arith.addf %57, %58 : vector<8x128xf32>
    %60 = arith.negf %59 : vector<8x128xf32>
    %61 = math.exp %60 : vector<8x128xf32>
    %cst_40 = arith.constant 1.000000e+00 : f32
    %62 = vector.broadcast %cst_40 : f32 to vector<8x128xf32>
    %63 = arith.addf %62, %61 : vector<8x128xf32>
    %64 = arith.divf %62, %63 : vector<8x128xf32>
    %c40_41 = arith.constant 40 : index
    %c0_42 = arith.constant 0 : index
    %65 = vector.load %arg8[%c40_41, %c0_42] : memref<64x128xf32, #tpu.memory_space<vmem>>, vector<8x128xf32>
    tpu.vector_store %arg8[%c40_41, %c0_42], %64 {strides = array<i32>} : memref<64x128xf32, #tpu.memory_space<vmem>>, vector<8x128xf32>,
    %cst_43 = arith.constant dense<0.000000e+00> : vector<8x128xf32>
    %66 = tpu.matmul %64, %10, %cst_43 {dimension_numbers = #tpu.dot_dimension_numbers<[1], [0], [0], [1], [0, 0, 1, 1], [], []>} : vector<8x128xf32>, vector<128x128xf32>, vector<8x128xf32> -> vector<8x128xf32>
    %c48 = arith.constant 48 : index
    %c0_44 = arith.constant 0 : index
    %67 = vector.load %arg8[%c48, %c0_44] : memref<64x128xf32, #tpu.memory_space<vmem>>, vector<8x128xf32>
    %68 = arith.addf %66, %67 : vector<8x128xf32>
    %69 = arith.negf %68 : vector<8x128xf32>
    %70 = math.exp %69 : vector<8x128xf32>
    %cst_45 = arith.constant 1.000000e+00 : f32
    %71 = vector.broadcast %cst_45 : f32 to vector<8x128xf32>
    %72 = arith.addf %71, %70 : vector<8x128xf32>
    %73 = arith.divf %71, %72 : vector<8x128xf32>
    %c48_46 = arith.constant 48 : index
    %c0_47 = arith.constant 0 : index
    %74 = vector.load %arg8[%c48_46, %c0_47] : memref<64x128xf32, #tpu.memory_space<vmem>>, vector<8x128xf32>
    tpu.vector_store %arg8[%c48_46, %c0_47], %73 {strides = array<i32>} : memref<64x128xf32, #tpu.memory_space<vmem>>, vector<8x128xf32>,
    %cst_48 = arith.constant dense<0.000000e+00> : vector<8x128xf32>
    %75 = tpu.matmul %73, %10, %cst_48 {dimension_numbers = #tpu.dot_dimension_numbers<[1], [0], [0], [1], [0, 0, 1, 1], [], []>} : vector<8x128xf32>, vector<128x128xf32>, vector<8x128xf32> -> vector<8x128xf32>
    %c56 = arith.constant 56 : index
    %c0_49 = arith.constant 0 : index
    %76 = vector.load %arg8[%c56, %c0_49] : memref<64x128xf32, #tpu.memory_space<vmem>>, vector<8x128xf32>
    %77 = arith.addf %75, %76 : vector<8x128xf32>
    %78 = arith.negf %77 : vector<8x128xf32>
    %79 = math.exp %78 : vector<8x128xf32>
    %cst_50 = arith.constant 1.000000e+00 : f32
    %80 = vector.broadcast %cst_50 : f32 to vector<8x128xf32>
    %81 = arith.addf %80, %79 : vector<8x128xf32>
    %82 = arith.divf %80, %81 : vector<8x128xf32>
    %c56_51 = arith.constant 56 : index
    %c0_52 = arith.constant 0 : index
    %83 = vector.load %arg8[%c56_51, %c0_52] : memref<64x128xf32, #tpu.memory_space<vmem>>, vector<8x128xf32>
    tpu.vector_store %arg8[%c56_51, %c0_52], %82 {strides = array<i32>} : memref<64x128xf32, #tpu.memory_space<vmem>>, vector<8x128xf32>,
    %c0_53 = arith.constant 0 : index
    %c0_54 = arith.constant 0 : index
    %84 = vector.load %arg9[%c0_53, %c0_54] : memref<8x128xf32, #tpu.memory_space<vmem>>, vector<8x128xf32>
    tpu.vector_store %arg9[%c0_53, %c0_54], %82 {strides = array<i32>} : memref<8x128xf32, #tpu.memory_space<vmem>>, vector<8x128xf32>,
    %c0_55 = arith.constant 0 : index
    %c0_56 = arith.constant 0 : index
    %85 = vector.load %arg8[%c0_55, %c0_56] : memref<64x128xf32, #tpu.memory_space<vmem>>, vector<64x128xf32>
    %c0_57 = arith.constant 0 : index
    %c0_58 = arith.constant 0 : index
    %86 = vector.load %arg5[%c0_57, %c0_58] : memref<128x128xf32, #tpu.memory_space<vmem>>, vector<128x128xf32>
    %cst_59 = arith.constant dense<0.000000e+00> : vector<64x128xf32>
    %87 = tpu.matmul %85, %86, %cst_59 {dimension_numbers = #tpu.dot_dimension_numbers<[1], [0], [0], [1], [0, 0, 1, 1], [], []>} : vector<64x128xf32>, vector<128x128xf32>, vector<64x128xf32> -> vector<64x128xf32>
    %c0_60 = arith.constant 0 : index
    %c0_61 = arith.constant 0 : index
    %88 = vector.load %arg6[%c0_60, %c0_61] : memref<1x128xf32, #tpu.memory_space<vmem>>, vector<1x128xf32>
    %89 = vector.broadcast %88 : vector<1x128xf32> to vector<64x128xf32>
    %90 = arith.addf %87, %89 : vector<64x128xf32>
    %c0_62 = arith.constant 0 : index
    %c0_63 = arith.constant 0 : index
    %91 = vector.load %arg7[%c0_62, %c0_63] : memref<64x128xf32, #tpu.memory_space<vmem>>, vector<64x128xf32>
    tpu.vector_store %arg7[%c0_62, %c0_63], %90 {strides = array<i32>} : memref<64x128xf32, #tpu.memory_space<vmem>>, vector<64x128xf32>,
    return
  }
  func.func @transform_0(%arg0: i32) -> (i32, i32) {
    %c0_i32 = arith.constant 0 : i32
    %c0_i32_0 = arith.constant 0 : i32
    return %arg0, %c0_i32 : i32, i32
  }
  func.func @transform_1(%arg0: i32) -> (i32, i32) {
    %c0_i32 = arith.constant 0 : i32
    %c0_i32_0 = arith.constant 0 : i32
    %c0_i32_1 = arith.constant 0 : i32
    return %c0_i32, %c0_i32_0 : i32, i32
  }
  func.func @transform_2(%arg0: i32) -> (i32, i32) {
    %c0_i32 = arith.constant 0 : i32
    %c0_i32_0 = arith.constant 0 : i32
    %c0_i32_1 = arith.constant 0 : i32
    return %c0_i32, %c0_i32_0 : i32, i32
  }
  func.func @transform_3(%arg0: i32) -> (i32, i32) {
    %c0_i32 = arith.constant 0 : i32
    %c0_i32_0 = arith.constant 0 : i32
    %c0_i32_1 = arith.constant 0 : i32
    return %c0_i32, %c0_i32_0 : i32, i32
  }
  func.func @transform_4(%arg0: i32) -> (i32, i32) {
    %c0_i32 = arith.constant 0 : i32
    %c0_i32_0 = arith.constant 0 : i32
    %c0_i32_1 = arith.constant 0 : i32
    return %c0_i32, %c0_i32_0 : i32, i32
  }
  func.func @transform_5(%arg0: i32) -> (i32, i32) {
    %c0_i32 = arith.constant 0 : i32
    %c0_i32_0 = arith.constant 0 : i32
    %c0_i32_1 = arith.constant 0 : i32
    return %c0_i32, %c0_i32_0 : i32, i32
  }
  func.func @transform_6(%arg0: i32) -> (i32, i32) {
    %c0_i32 = arith.constant 0 : i32
    %c0_i32_0 = arith.constant 0 : i32
    return %arg0, %c0_i32 : i32, i32
  }
  func.func @transform_7(%arg0: i32) -> (i32, i32) {
    %c0_i32 = arith.constant 0 : i32
    %c0_i32_0 = arith.constant 0 : i32
    return %arg0, %c0_i32 : i32, i32
  }
}

</mosaic_0001>

<llo_original>
// kernel: rnn_net_forward.1
$region0: #{rnn_net_forward.1}
  #allocation0 [shape = 'u32[]', space=smem, size = 0x4, offset = 0x4, fixed_abs, tag = 'smem constant byte address 0x4 - core index']
  #allocation1 [shape = 'u32[144,128]{1,0:T(1,128)}', space=vmem, size = 0x12000, scoped, tag = 'internal scratch']
  #allocation2 [shape = 'f32[8,128]{1,0:T(8,128)}', space=vmem, size = 0x1000, scoped, tag = 'scratch operand']
  %s0 = inlined_call_operand.vmem [shape: f32[64,128], index: 0, kind: input, shape index: {}]
  %s1 = inlined_call_operand.vmem [shape: f32[128,128], index: 1, kind: input, shape index: {}]
  %s2 = inlined_call_operand.vmem [shape: f32[1,128], index: 2, kind: input, shape index: {}]
  %s3 = inlined_call_operand.vmem [shape: f32[128,128], index: 3, kind: input, shape index: {}]
  %s4 = inlined_call_operand.vmem [shape: f32[128,128], index: 4, kind: input, shape index: {}]
  %s5 = inlined_call_operand.vmem [shape: f32[1,128], index: 5, kind: input, shape index: {}]
  %s6 = inlined_call_operand.vmem [shape: f32[64,128], index: 6, kind: output, shape index: {0}]
  %s7 = inlined_call_operand.vmem [shape: f32[64,128], index: 7, kind: output, shape index: {1}]
  %8 = xla_tuple %s6, %s7
  %s9 = sld [smem:[#allocation0]]
  $region46: #{rnn_net_forward.1} parent=0
    _
  %s11 = ssub.s32 1, %s9
  %s12 = scalar_select 0, %s11, %s9
  // Predicated region
  $region2: #{rnn_net_forward.1} parent=0 // pred_check
    _
  $region3: #{rnn_net_forward.1} parent=0 // pred_check_branch
    %14 = sbr.rel (0) target = $region5
  $region4: #{rnn_net_forward.1} parent=0 // pred_region
    _
  $region5: #{rnn_net_forward.1} parent=0 // pred_fallthru
    _
  // Predicated region
  $region6: #{rnn_net_forward.1} parent=0 // pred_check
    _
  $region7: #{rnn_net_forward.1} parent=0 // pred_check_branch
    %16 = sbr.rel (0) target = $region9
  $region8: #{rnn_net_forward.1} parent=0 // pred_region
    _
  $region9: #{rnn_net_forward.1} parent=0 // pred_fallthru
    _
  // Predicated region
  $region10: #{rnn_net_forward.1} parent=0 // pred_check
    _
  $region11: #{rnn_net_forward.1} parent=0 // pred_check_branch
    %18 = sbr.rel (0) target = $region13
  $region12: #{rnn_net_forward.1} parent=0 // pred_region
    _
  $region13: #{rnn_net_forward.1} parent=0 // pred_fallthru
    _
  // Predicated region
  $region14: #{rnn_net_forward.1} parent=0 // pred_check
    _
  $region15: #{rnn_net_forward.1} parent=0 // pred_check_branch
    %20 = sbr.rel (0) target = $region17
  $region16: #{rnn_net_forward.1} parent=0 // pred_region
    _
  $region17: #{rnn_net_forward.1} parent=0 // pred_fallthru
    _
  // Predicated region
  $region18: #{rnn_net_forward.1} parent=0 // pred_check
    _
  $region19: #{rnn_net_forward.1} parent=0 // pred_check_branch
    %22 = sbr.rel (0) target = $region21
  $region20: #{rnn_net_forward.1} parent=0 // pred_region
    _
  $region21: #{rnn_net_forward.1} parent=0 // pred_fallthru
    _
  // Predicated region
  $region22: #{rnn_net_forward.1} parent=0 // pred_check
    _
  $region23: #{rnn_net_forward.1} parent=0 // pred_check_branch
    %24 = sbr.rel (0) target = $region25
  $region24: #{rnn_net_forward.1} parent=0 // pred_region
    _
  $region25: #{rnn_net_forward.1} parent=0 // pred_fallthru
    _
  %p25 = scmp.eq.s32.totalorder 0, 0
  // Predicated region
  $region26: #{rnn_net_forward.1} parent=0 // pred_check
    %p26 = pneg %p25
  $region27: #{rnn_net_forward.1} parent=0 // pred_check_branch
    %28 = sbr.rel (%p26) target = $region29
  $region28: #{rnn_net_forward.1} parent=0 // pred_region
    %29 = vst [vmem:[#allocation2] sm:$0xff] 0.0
  $region29: #{rnn_net_forward.1} parent=0 // pred_fallthru
    _
  %v30 = vld [vmem:[%s0] sm:$0xff]
  %v31 = vld [vmem:[%s0 + $0x8] sm:$0xff]
  %v32 = vld [vmem:[%s0 + $0x10] sm:$0xff]
  %v33 = vld [vmem:[%s0 + $0x18] sm:$0xff]
  %v34 = vld [vmem:[%s0 + $0x20] sm:$0xff]
  %v35 = vld [vmem:[%s0 + $0x28] sm:$0xff]
  %v36 = vld [vmem:[%s0 + $0x30] sm:$0xff]
  %v37 = vld [vmem:[%s0 + $0x38] sm:$0xff]
  %v38 = vld [vmem:[%s1] sm:$0xff]
  %v39 = vld [vmem:[%s1 + $0x8] sm:$0xff]
  %v40 = vld [vmem:[%s1 + $0x10] sm:$0xff]
  %v41 = vld [vmem:[%s1 + $0x18] sm:$0xff]
  %v42 = vld [vmem:[%s1 + $0x20] sm:$0xff]
  %v43 = vld [vmem:[%s1 + $0x28] sm:$0xff]
  %v44 = vld [vmem:[%s1 + $0x30] sm:$0xff]
  %v45 = vld [vmem:[%s1 + $0x38] sm:$0xff]
  %v46 = vld [vmem:[%s1 + $0x40] sm:$0xff]
  %v47 = vld [vmem:[%s1 + $0x48] sm:$0xff]
  %v48 = vld [vmem:[%s1 + $0x50] sm:$0xff]
  %v49 = vld [vmem:[%s1 + $0x58] sm:$0xff]
  %v50 = vld [vmem:[%s1 + $0x60] sm:$0xff]
  %v51 = vld [vmem:[%s1 + $0x68] sm:$0xff]
  %v52 = vld [vmem:[%s1 + $0x70] sm:$0xff]
  %v53 = vld [vmem:[%s1 + $0x78] sm:$0xff]
  %v54 = vld [vmem:[%s2] sm:$0x1]
  %v56 = vlaneseq
  %v57 = vshrl.u32 %v56, 7
  %v58 = vsub.s32 0, %v57
  %v59 = vrot.slane %v54, %v58
  %61 = vmatprep.subr.mxu0 0.0
  %62 = vmatpush1.msra.mxu0 %v38
  %63 = vmatprep.subr.mxu0 0.0
  %64 = vmatpush1.msra.mxu0 %v39
  %65 = vmatprep.subr.mxu0 0.0
  %66 = vmatpush1.msra.mxu0 %v40
  %67 = vmatprep.subr.mxu0 0.0
  %68 = vmatpush1.msra.mxu0 %v41
  %69 = vmatprep.subr.mxu0 0.0
  %70 = vmatpush1.msra.mxu0 %v42
  %71 = vmatprep.subr.mxu0 0.0
  %72 = vmatpush1.msra.mxu0 %v43
  %73 = vmatprep.subr.mxu0 0.0
  %74 = vmatpush1.msra.mxu0 %v44
  %75 = vmatprep.subr.mxu0 0.0
  %76 = vmatpush1.msra.mxu0 %v45
  %77 = vmatprep.subr.mxu0 0.0
  %78 = vmatpush1.msra.mxu0 %v46
  %79 = vmatprep.subr.mxu0 0.0
  %80 = vmatpush1.msra.mxu0 %v47
  %81 = vmatprep.subr.mxu0 0.0
  %82 = vmatpush1.msra.mxu0 %v48
  %83 = vmatprep.subr.mxu0 0.0
  %84 = vmatpush1.msra.mxu0 %v49
  %85 = vmatprep.subr.mxu0 0.0
  %86 = vmatpush1.msra.mxu0 %v50
  %87 = vmatprep.subr.mxu0 0.0
  %88 = vmatpush1.msra.mxu0 %v51
  %89 = vmatprep.subr.mxu0 0.0
  %90 = vmatpush1.msra.mxu0 %v52
  %91 = vmatprep.subr.mxu0 0.0
  %92 = vmatpush1.msra.mxu0 %v53
  %93 = vmatprep.subr.mxu0 0.0
  %94 = vmatpush1.msra.mxu0 0.0
  %95 = vmatprep.subr.mxu0 0.0
  %96 = vmatpush1.msra.mxu0 0.0
  %97 = vmatprep.subr.mxu0 0.0
  %98 = vmatpush1.msra.mxu0 0.0
  %99 = vmatprep.subr.mxu0 0.0
  %100 = vmatpush1.msra.mxu0 0.0
  %101 = vmatprep.subr.mxu0 0.0
  %102 = vmatpush1.msra.mxu0 0.0
  %103 = vmatprep.subr.mxu0 0.0
  %104 = vmatpush1.msra.mxu0 0.0
  %105 = vmatprep.subr.mxu0 0.0
  %106 = vmatpush1.msra.mxu0 0.0
  %107 = vmatprep.subr.mxu0 0.0
  %108 = vmatpush1.msra.mxu0 0.0
  %109 = vmatprep.subr.mxu0 0.0
  %110 = vmatpush1.msra.mxu0 0.0
  %111 = vmatprep.subr.mxu0 0.0
  %112 = vmatpush1.msra.mxu0 0.0
  %113 = vmatprep.subr.mxu0 0.0
  %114 = vmatpush1.msra.mxu0 0.0
  %115 = vmatprep.subr.mxu0 0.0
  %116 = vmatpush1.msra.mxu0 0.0
  %117 = vmatprep.subr.mxu0 0.0
  %118 = vmatpush1.msra.mxu0 0.0
  %119 = vmatprep.subr.mxu0 0.0
  %120 = vmatpush1.msra.mxu0 0.0
  %121 = vmatprep.subr.mxu0 0.0
  %122 = vmatpush1.msra.mxu0 0.0
  %123 = vmatprep.subr.mxu0 0.0
  %124 = vmatpush1.msra.mxu0 0.0
  %125 = vmatprep.mubr.f32.mxu0 0.0
  %126 = vmatmul.mubr.f32.gmra.mrb[0].mxu0 %v30
  %v127 = vpop.f32.mrb[0].mxu0
  %v128 = vadd.f32 %v59, %v127
  %v129 = vpop.f32.mrb[0].mxu0
  %130 = vmatprep.mubr.f32.mxu0 0.0
  %131 = vmatmul.mubr.f32.gmra.mrb[0].mxu0 %v31
  %v132 = vpop.f32.mrb[0].mxu0
  %v133 = vadd.f32 %v59, %v132
  %v134 = vpop.f32.mrb[0].mxu0
  %135 = vmatprep.mubr.f32.mxu0 0.0
  %136 = vmatmul.mubr.f32.gmra.mrb[0].mxu0 %v32
  %v137 = vpop.f32.mrb[0].mxu0
  %v138 = vadd.f32 %v59, %v137
  %v139 = vpop.f32.mrb[0].mxu0
  %140 = vmatprep.mubr.f32.mxu0 0.0
  %141 = vmatmul.mubr.f32.gmra.mrb[0].mxu0 %v33
  %v142 = vpop.f32.mrb[0].mxu0
  %v143 = vadd.f32 %v59, %v142
  %v144 = vpop.f32.mrb[0].mxu0
  %145 = vmatprep.mubr.f32.mxu0 0.0
  %146 = vmatmul.mubr.f32.gmra.mrb[0].mxu0 %v34
  %v147 = vpop.f32.mrb[0].mxu0
  %v148 = vadd.f32 %v59, %v147
  %v149 = vpop.f32.mrb[0].mxu0
  %150 = vmatprep.mubr.f32.mxu0 0.0
  %151 = vmatmul.mubr.f32.gmra.mrb[0].mxu0 %v35
  %v152 = vpop.f32.mrb[0].mxu0
  %v153 = vadd.f32 %v59, %v152
  %v154 = vpop.f32.mrb[0].mxu0
  %155 = vmatprep.mubr.f32.mxu0 0.0
  %156 = vmatmul.mubr.f32.gmra.mrb[0].mxu0 %v36
  %v157 = vpop.f32.mrb[0].mxu0
  %v158 = vadd.f32 %v59, %v157
  %v159 = vpop.f32.mrb[0].mxu0
  %160 = vmatprep.mubr.f32.mxu0 0.0
  %161 = vmatmul.mubr.f32.gmra.mrb[0].mxu0 %v37
  %v162 = vpop.f32.mrb[0].mxu0
  %v163 = vadd.f32 %v59, %v162
  %v164 = vpop.f32.mrb[0].mxu0
  %165 = vdwg.mxu0
  %166 = vst [vmem:[%s7] sm:$0xff] %v128
  %167 = vst [vmem:[%s7 + $0x8] sm:$0xff] %v133
  %168 = vst [vmem:[%s7 + $0x10] sm:$0xff] %v138
  %169 = vst [vmem:[%s7 + $0x18] sm:$0xff] %v143
  %170 = vst [vmem:[%s7 + $0x20] sm:$0xff] %v148
  %171 = vst [vmem:[%s7 + $0x28] sm:$0xff] %v153
  %172 = vst [vmem:[%s7 + $0x30] sm:$0xff] %v158
  %173 = vst [vmem:[%s7 + $0x38] sm:$0xff] %v163
  %v174 = vld [vmem:[%s3] sm:$0xff]
  %v175 = vld [vmem:[%s3 + $0x8] sm:$0xff]
  %v176 = vld [vmem:[%s3 + $0x10] sm:$0xff]
  %v177 = vld [vmem:[%s3 + $0x18] sm:$0xff]
  %v178 = vld [vmem:[%s3 + $0x20] sm:$0xff]
  %v179 = vld [vmem:[%s3 + $0x28] sm:$0xff]
  %v180 = vld [vmem:[%s3 + $0x30] sm:$0xff]
  %v181 = vld [vmem:[%s3 + $0x38] sm:$0xff]
  %v182 = vld [vmem:[%s3 + $0x40] sm:$0xff]
  %v183 = vld [vmem:[%s3 + $0x48] sm:$0xff]
  %v184 = vld [vmem:[%s3 + $0x50] sm:$0xff]
  %v185 = vld [vmem:[%s3 + $0x58] sm:$0xff]
  %v186 = vld [vmem:[%s3 + $0x60] sm:$0xff]
  %v187 = vld [vmem:[%s3 + $0x68] sm:$0xff]
  %v188 = vld [vmem:[%s3 + $0x70] sm:$0xff]
  %v189 = vld [vmem:[%s3 + $0x78] sm:$0xff]
  %v190 = vld [vmem:[#allocation2] sm:$0xff]
  %v191 = vld [vmem:[%s7] sm:$0xff]
  %192 = vmatprep.subr.mxu0 0.0
  %193 = vmatpush1.msra.mxu0 %v174
  %194 = vmatprep.subr.mxu0 0.0
  %195 = vmatpush1.msra.mxu0 %v175
  %196 = vmatprep.subr.mxu0 0.0
  %197 = vmatpush1.msra.mxu0 %v176
  %198 = vmatprep.subr.mxu0 0.0
  %199 = vmatpush1.msra.mxu0 %v177
  %200 = vmatprep.subr.mxu0 0.0
  %201 = vmatpush1.msra.mxu0 %v178
  %202 = vmatprep.subr.mxu0 0.0
  %203 = vmatpush1.msra.mxu0 %v179
  %204 = vmatprep.subr.mxu0 0.0
  %205 = vmatpush1.msra.mxu0 %v180
  %206 = vmatprep.subr.mxu0 0.0
  %207 = vmatpush1.msra.mxu0 %v181
  %208 = vmatprep.subr.mxu0 0.0
  %209 = vmatpush1.msra.mxu0 %v182
  %210 = vmatprep.subr.mxu0 0.0
  %211 = vmatpush1.msra.mxu0 %v183
  %212 = vmatprep.subr.mxu0 0.0
  %213 = vmatpush1.msra.mxu0 %v184
  %214 = vmatprep.subr.mxu0 0.0
  %215 = vmatpush1.msra.mxu0 %v185
  %216 = vmatprep.subr.mxu0 0.0
  %217 = vmatpush1.msra.mxu0 %v186
  %218 = vmatprep.subr.mxu0 0.0
  %219 = vmatpush1.msra.mxu0 %v187
  %220 = vmatprep.subr.mxu0 0.0
  %221 = vmatpush1.msra.mxu0 %v188
  %222 = vmatprep.subr.mxu0 0.0
  %223 = vmatpush1.msra.mxu0 %v189
  %224 = vmatprep.subr.mxu0 0.0
  %225 = vmatpush1.msra.mxu0 0.0
  %226 = vmatprep.subr.mxu0 0.0
  %227 = vmatpush1.msra.mxu0 0.0
  %228 = vmatprep.subr.mxu0 0.0
  %229 = vmatpush1.msra.mxu0 0.0
  %230 = vmatprep.subr.mxu0 0.0
  %231 = vmatpush1.msra.mxu0 0.0
  %232 = vmatprep.subr.mxu0 0.0
  %233 = vmatpush1.msra.mxu0 0.0
  %234 = vmatprep.subr.mxu0 0.0
  %235 = vmatpush1.msra.mxu0 0.0
  %236 = vmatprep.subr.mxu0 0.0
  %237 = vmatpush1.msra.mxu0 0.0
  %238 = vmatprep.subr.mxu0 0.0
  %239 = vmatpush1.msra.mxu0 0.0
  %240 = vmatprep.subr.mxu0 0.0
  %241 = vmatpush1.msra.mxu0 0.0
  %242 = vmatprep.subr.mxu0 0.0
  %243 = vmatpush1.msra.mxu0 0.0
  %244 = vmatprep.subr.mxu0 0.0
  %245 = vmatpush1.msra.mxu0 0.0
  %246 = vmatprep.subr.mxu0 0.0
  %247 = vmatpush1.msra.mxu0 0.0
  %248 = vmatprep.subr.mxu0 0.0
  %249 = vmatpush1.msra.mxu0 0.0
  %250 = vmatprep.subr.mxu0 0.0
  %251 = vmatpush1.msra.mxu0 0.0
  %252 = vmatprep.subr.mxu0 0.0
  %253 = vmatpush1.msra.mxu0 0.0
  %254 = vmatprep.subr.mxu0 0.0
  %255 = vmatpush1.msra.mxu0 0.0
  %256 = vmatprep.mubr.f32.mxu0 0.0
  %257 = vmatmul.mubr.f32.gmra.mrb[0].mxu0 %v190
  %v258 = vpop.f32.mrb[0].mxu0
  %v259 = vadd.f32 %v191, %v258
  %v260 = vpop.f32.mrb[0].mxu0
  %261 = vdwg.mxu0
  %v262 = vxor.u32 %v259, 2147483648
  %v263 = vmul.f32 %v262, 1.442695
  %v264 = vpow.pop %v263
  %v265 = vadd.f32 %v264, 1.0
  %v266 = vrcp.pop %v265
  %v267 = vmul.f32 1.0, %v266
  %268 = vst [vmem:[%s7] sm:$0xff] %v267
  %v269 = vld [vmem:[%s7 + $0x8] sm:$0xff]
  %270 = vmatprep.subr.mxu0 0.0
  %271 = vmatpush1.msra.mxu0 %v174
  %272 = vmatprep.subr.mxu0 0.0
  %273 = vmatpush1.msra.mxu0 %v175
  %274 = vmatprep.subr.mxu0 0.0
  %275 = vmatpush1.msra.mxu0 %v176
  %276 = vmatprep.subr.mxu0 0.0
  %277 = vmatpush1.msra.mxu0 %v177
  %278 = vmatprep.subr.mxu0 0.0
  %279 = vmatpush1.msra.mxu0 %v178
  %280 = vmatprep.subr.mxu0 0.0
  %281 = vmatpush1.msra.mxu0 %v179
  %282 = vmatprep.subr.mxu0 0.0
  %283 = vmatpush1.msra.mxu0 %v180
  %284 = vmatprep.subr.mxu0 0.0
  %285 = vmatpush1.msra.mxu0 %v181
  %286 = vmatprep.subr.mxu0 0.0
  %287 = vmatpush1.msra.mxu0 %v182
  %288 = vmatprep.subr.mxu0 0.0
  %289 = vmatpush1.msra.mxu0 %v183
  %290 = vmatprep.subr.mxu0 0.0
  %291 = vmatpush1.msra.mxu0 %v184
  %292 = vmatprep.subr.mxu0 0.0
  %293 = vmatpush1.msra.mxu0 %v185
  %294 = vmatprep.subr.mxu0 0.0
  %295 = vmatpush1.msra.mxu0 %v186
  %296 = vmatprep.subr.mxu0 0.0
  %297 = vmatpush1.msra.mxu0 %v187
  %298 = vmatprep.subr.mxu0 0.0
  %299 = vmatpush1.msra.mxu0 %v188
  %300 = vmatprep.subr.mxu0 0.0
  %301 = vmatpush1.msra.mxu0 %v189
  %302 = vmatprep.subr.mxu0 0.0
  %303 = vmatpush1.msra.mxu0 0.0
  %304 = vmatprep.subr.mxu0 0.0
  %305 = vmatpush1.msra.mxu0 0.0
  %306 = vmatprep.subr.mxu0 0.0
  %307 = vmatpush1.msra.mxu0 0.0
  %308 = vmatprep.subr.mxu0 0.0
  %309 = vmatpush1.msra.mxu0 0.0
  %310 = vmatprep.subr.mxu0 0.0
  %311 = vmatpush1.msra.mxu0 0.0
  %312 = vmatprep.subr.mxu0 0.0
  %313 = vmatpush1.msra.mxu0 0.0
  %314 = vmatprep.subr.mxu0 0.0
  %315 = vmatpush1.msra.mxu0 0.0
  %316 = vmatprep.subr.mxu0 0.0
  %317 = vmatpush1.msra.mxu0 0.0
  %318 = vmatprep.subr.mxu0 0.0
  %319 = vmatpush1.msra.mxu0 0.0
  %320 = vmatprep.subr.mxu0 0.0
  %321 = vmatpush1.msra.mxu0 0.0
  %322 = vmatprep.subr.mxu0 0.0
  %323 = vmatpush1.msra.mxu0 0.0
  %324 = vmatprep.subr.mxu0 0.0
  %325 = vmatpush1.msra.mxu0 0.0
  %326 = vmatprep.subr.mxu0 0.0
  %327 = vmatpush1.msra.mxu0 0.0
  %328 = vmatprep.subr.mxu0 0.0
  %329 = vmatpush1.msra.mxu0 0.0
  %330 = vmatprep.subr.mxu0 0.0
  %331 = vmatpush1.msra.mxu0 0.0
  %332 = vmatprep.subr.mxu0 0.0
  %333 = vmatpush1.msra.mxu0 0.0
  %334 = vmatprep.mubr.f32.mxu0 0.0
  %335 = vmatmul.mubr.f32.gmra.mrb[0].mxu0 %v267
  %v336 = vpop.f32.mrb[0].mxu0
  %v337 = vadd.f32 %v269, %v336
  %v338 = vpop.f32.mrb[0].mxu0
  %339 = vdwg.mxu0
  %v340 = vxor.u32 %v337, 2147483648
  %v341 = vmul.f32 %v340, 1.442695
  %v342 = vpow.pop %v341
  %v343 = vadd.f32 %v342, 1.0
  %v344 = vrcp.pop %v343
  %v345 = vmul.f32 1.0, %v344
  %346 = vst [vmem:[%s7 + $0x8] sm:$0xff] %v345
  %v347 = vld [vmem:[%s7 + $0x10] sm:$0xff]
  %348 = vmatprep.subr.mxu0 0.0
  %349 = vmatpush1.msra.mxu0 %v174
  %350 = vmatprep.subr.mxu0 0.0
  %351 = vmatpush1.msra.mxu0 %v175
  %352 = vmatprep.subr.mxu0 0.0
  %353 = vmatpush1.msra.mxu0 %v176
  %354 = vmatprep.subr.mxu0 0.0
  %355 = vmatpush1.msra.mxu0 %v177
  %356 = vmatprep.subr.mxu0 0.0
  %357 = vmatpush1.msra.mxu0 %v178
  %358 = vmatprep.subr.mxu0 0.0
  %359 = vmatpush1.msra.mxu0 %v179
  %360 = vmatprep.subr.mxu0 0.0
  %361 = vmatpush1.msra.mxu0 %v180
  %362 = vmatprep.subr.mxu0 0.0
  %363 = vmatpush1.msra.mxu0 %v181
  %364 = vmatprep.subr.mxu0 0.0
  %365 = vmatpush1.msra.mxu0 %v182
  %366 = vmatprep.subr.mxu0 0.0
  %367 = vmatpush1.msra.mxu0 %v183
  %368 = vmatprep.subr.mxu0 0.0
  %369 = vmatpush1.msra.mxu0 %v184
  %370 = vmatprep.subr.mxu0 0.0
  %371 = vmatpush1.msra.mxu0 %v185
  %372 = vmatprep.subr.mxu0 0.0
  %373 = vmatpush1.msra.mxu0 %v186
  %374 = vmatprep.subr.mxu0 0.0
  %375 = vmatpush1.msra.mxu0 %v187
  %376 = vmatprep.subr.mxu0 0.0
  %377 = vmatpush1.msra.mxu0 %v188
  %378 = vmatprep.subr.mxu0 0.0
  %379 = vmatpush1.msra.mxu0 %v189
  %380 = vmatprep.subr.mxu0 0.0
  %381 = vmatpush1.msra.mxu0 0.0
  %382 = vmatprep.subr.mxu0 0.0
  %383 = vmatpush1.msra.mxu0 0.0
  %384 = vmatprep.subr.mxu0 0.0
  %385 = vmatpush1.msra.mxu0 0.0
  %386 = vmatprep.subr.mxu0 0.0
  %387 = vmatpush1.msra.mxu0 0.0
  %388 = vmatprep.subr.mxu0 0.0
  %389 = vmatpush1.msra.mxu0 0.0
  %390 = vmatprep.subr.mxu0 0.0
  %391 = vmatpush1.msra.mxu0 0.0
  %392 = vmatprep.subr.mxu0 0.0
  %393 = vmatpush1.msra.mxu0 0.0
  %394 = vmatprep.subr.mxu0 0.0
  %395 = vmatpush1.msra.mxu0 0.0
  %396 = vmatprep.subr.mxu0 0.0
  %397 = vmatpush1.msra.mxu0 0.0
  %398 = vmatprep.subr.mxu0 0.0
  %399 = vmatpush1.msra.mxu0 0.0
  %400 = vmatprep.subr.mxu0 0.0
  %401 = vmatpush1.msra.mxu0 0.0
  %402 = vmatprep.subr.mxu0 0.0
  %403 = vmatpush1.msra.mxu0 0.0
  %404 = vmatprep.subr.mxu0 0.0
  %405 = vmatpush1.msra.mxu0 0.0
  %406 = vmatprep.subr.mxu0 0.0
  %407 = vmatpush1.msra.mxu0 0.0
  %408 = vmatprep.subr.mxu0 0.0
  %409 = vmatpush1.msra.mxu0 0.0
  %410 = vmatprep.subr.mxu0 0.0
  %411 = vmatpush1.msra.mxu0 0.0
  %412 = vmatprep.mubr.f32.mxu0 0.0
  %413 = vmatmul.mubr.f32.gmra.mrb[0].mxu0 %v345
  %v414 = vpop.f32.mrb[0].mxu0
  %v415 = vadd.f32 %v347, %v414
  %v416 = vpop.f32.mrb[0].mxu0
  %417 = vdwg.mxu0
  %v418 = vxor.u32 %v415, 2147483648
  %v419 = vmul.f32 %v418, 1.442695
  %v420 = vpow.pop %v419
  %v421 = vadd.f32 %v420, 1.0
  %v422 = vrcp.pop %v421
  %v423 = vmul.f32 1.0, %v422
  %424 = vst [vmem:[%s7 + $0x10] sm:$0xff] %v423
  %v425 = vld [vmem:[%s7 + $0x18] sm:$0xff]
  %426 = vmatprep.subr.mxu0 0.0
  %427 = vmatpush1.msra.mxu0 %v174
  %428 = vmatprep.subr.mxu0 0.0
  %429 = vmatpush1.msra.mxu0 %v175
  %430 = vmatprep.subr.mxu0 0.0
  %431 = vmatpush1.msra.mxu0 %v176
  %432 = vmatprep.subr.mxu0 0.0
  %433 = vmatpush1.msra.mxu0 %v177
  %434 = vmatprep.subr.mxu0 0.0
  %435 = vmatpush1.msra.mxu0 %v178
  %436 = vmatprep.subr.mxu0 0.0
  %437 = vmatpush1.msra.mxu0 %v179
  %438 = vmatprep.subr.mxu0 0.0
  %439 = vmatpush1.msra.mxu0 %v180
  %440 = vmatprep.subr.mxu0 0.0
  %441 = vmatpush1.msra.mxu0 %v181
  %442 = vmatprep.subr.mxu0 0.0
  %443 = vmatpush1.msra.mxu0 %v182
  %444 = vmatprep.subr.mxu0 0.0
  %445 = vmatpush1.msra.mxu0 %v183
  %446 = vmatprep.subr.mxu0 0.0
  %447 = vmatpush1.msra.mxu0 %v184
  %448 = vmatprep.subr.mxu0 0.0
  %449 = vmatpush1.msra.mxu0 %v185
  %450 = vmatprep.subr.mxu0 0.0
  %451 = vmatpush1.msra.mxu0 %v186
  %452 = vmatprep.subr.mxu0 0.0
  %453 = vmatpush1.msra.mxu0 %v187
  %454 = vmatprep.subr.mxu0 0.0
  %455 = vmatpush1.msra.mxu0 %v188
  %456 = vmatprep.subr.mxu0 0.0
  %457 = vmatpush1.msra.mxu0 %v189
  %458 = vmatprep.subr.mxu0 0.0
  %459 = vmatpush1.msra.mxu0 0.0
  %460 = vmatprep.subr.mxu0 0.0
  %461 = vmatpush1.msra.mxu0 0.0
  %462 = vmatprep.subr.mxu0 0.0
  %463 = vmatpush1.msra.mxu0 0.0
  %464 = vmatprep.subr.mxu0 0.0
  %465 = vmatpush1.msra.mxu0 0.0
  %466 = vmatprep.subr.mxu0 0.0
  %467 = vmatpush1.msra.mxu0 0.0
  %468 = vmatprep.subr.mxu0 0.0
  %469 = vmatpush1.msra.mxu0 0.0
  %470 = vmatprep.subr.mxu0 0.0
  %471 = vmatpush1.msra.mxu0 0.0
  %472 = vmatprep.subr.mxu0 0.0
  %473 = vmatpush1.msra.mxu0 0.0
  %474 = vmatprep.subr.mxu0 0.0
  %475 = vmatpush1.msra.mxu0 0.0
  %476 = vmatprep.subr.mxu0 0.0
  %477 = vmatpush1.msra.mxu0 0.0
  %478 = vmatprep.subr.mxu0 0.0
  %479 = vmatpush1.msra.mxu0 0.0
  %480 = vmatprep.subr.mxu0 0.0
  %481 = vmatpush1.msra.mxu0 0.0
  %482 = vmatprep.subr.mxu0 0.0
  %483 = vmatpush1.msra.mxu0 0.0
  %484 = vmatprep.subr.mxu0 0.0
  %485 = vmatpush1.msra.mxu0 0.0
  %486 = vmatprep.subr.mxu0 0.0
  %487 = vmatpush1.msra.mxu0 0.0
  %488 = vmatprep.subr.mxu0 0.0
  %489 = vmatpush1.msra.mxu0 0.0
  %490 = vmatprep.mubr.f32.mxu0 0.0
  %491 = vmatmul.mubr.f32.gmra.mrb[0].mxu0 %v423
  %v492 = vpop.f32.mrb[0].mxu0
  %v493 = vadd.f32 %v425, %v492
  %v494 = vpop.f32.mrb[0].mxu0
  %495 = vdwg.mxu0
  %v496 = vxor.u32 %v493, 2147483648
  %v497 = vmul.f32 %v496, 1.442695
  %v498 = vpow.pop %v497
  %v499 = vadd.f32 %v498, 1.0
  %v500 = vrcp.pop %v499
  %v501 = vmul.f32 1.0, %v500
  %502 = vst [vmem:[%s7 + $0x18] sm:$0xff] %v501
  %v503 = vld [vmem:[%s7 + $0x20] sm:$0xff]
  %504 = vmatprep.subr.mxu0 0.0
  %505 = vmatpush1.msra.mxu0 %v174
  %506 = vmatprep.subr.mxu0 0.0
  %507 = vmatpush1.msra.mxu0 %v175
  %508 = vmatprep.subr.mxu0 0.0
  %509 = vmatpush1.msra.mxu0 %v176
  %510 = vmatprep.subr.mxu0 0.0
  %511 = vmatpush1.msra.mxu0 %v177
  %512 = vmatprep.subr.mxu0 0.0
  %513 = vmatpush1.msra.mxu0 %v178
  %514 = vmatprep.subr.mxu0 0.0
  %515 = vmatpush1.msra.mxu0 %v179
  %516 = vmatprep.subr.mxu0 0.0
  %517 = vmatpush1.msra.mxu0 %v180
  %518 = vmatprep.subr.mxu0 0.0
  %519 = vmatpush1.msra.mxu0 %v181
  %520 = vmatprep.subr.mxu0 0.0
  %521 = vmatpush1.msra.mxu0 %v182
  %522 = vmatprep.subr.mxu0 0.0
  %523 = vmatpush1.msra.mxu0 %v183
  %524 = vmatprep.subr.mxu0 0.0
  %525 = vmatpush1.msra.mxu0 %v184
  %526 = vmatprep.subr.mxu0 0.0
  %527 = vmatpush1.msra.mxu0 %v185
  %528 = vmatprep.subr.mxu0 0.0
  %529 = vmatpush1.msra.mxu0 %v186
  %530 = vmatprep.subr.mxu0 0.0
  %531 = vmatpush1.msra.mxu0 %v187
  %532 = vmatprep.subr.mxu0 0.0
  %533 = vmatpush1.msra.mxu0 %v188
  %534 = vmatprep.subr.mxu0 0.0
  %535 = vmatpush1.msra.mxu0 %v189
  %536 = vmatprep.subr.mxu0 0.0
  %537 = vmatpush1.msra.mxu0 0.0
  %538 = vmatprep.subr.mxu0 0.0
  %539 = vmatpush1.msra.mxu0 0.0
  %540 = vmatprep.subr.mxu0 0.0
  %541 = vmatpush1.msra.mxu0 0.0
  %542 = vmatprep.subr.mxu0 0.0
  %543 = vmatpush1.msra.mxu0 0.0
  %544 = vmatprep.subr.mxu0 0.0
  %545 = vmatpush1.msra.mxu0 0.0
  %546 = vmatprep.subr.mxu0 0.0
  %547 = vmatpush1.msra.mxu0 0.0
  %548 = vmatprep.subr.mxu0 0.0
  %549 = vmatpush1.msra.mxu0 0.0
  %550 = vmatprep.subr.mxu0 0.0
  %551 = vmatpush1.msra.mxu0 0.0
  %552 = vmatprep.subr.mxu0 0.0
  %553 = vmatpush1.msra.mxu0 0.0
  %554 = vmatprep.subr.mxu0 0.0
  %555 = vmatpush1.msra.mxu0 0.0
  %556 = vmatprep.subr.mxu0 0.0
  %557 = vmatpush1.msra.mxu0 0.0
  %558 = vmatprep.subr.mxu0 0.0
  %559 = vmatpush1.msra.mxu0 0.0
  %560 = vmatprep.subr.mxu0 0.0
  %561 = vmatpush1.msra.mxu0 0.0
  %562 = vmatprep.subr.mxu0 0.0
  %563 = vmatpush1.msra.mxu0 0.0
  %564 = vmatprep.subr.mxu0 0.0
  %565 = vmatpush1.msra.mxu0 0.0
  %566 = vmatprep.subr.mxu0 0.0
  %567 = vmatpush1.msra.mxu0 0.0
  %568 = vmatprep.mubr.f32.mxu0 0.0
  %569 = vmatmul.mubr.f32.gmra.mrb[0].mxu0 %v501
  %v570 = vpop.f32.mrb[0].mxu0
  %v571 = vadd.f32 %v503, %v570
  %v572 = vpop.f32.mrb[0].mxu0
  %573 = vdwg.mxu0
  %v574 = vxor.u32 %v571, 2147483648
  %v575 = vmul.f32 %v574, 1.442695
  %v576 = vpow.pop %v575
  %v577 = vadd.f32 %v576, 1.0
  %v578 = vrcp.pop %v577
  %v579 = vmul.f32 1.0, %v578
  %580 = vst [vmem:[%s7 + $0x20] sm:$0xff] %v579
  %v581 = vld [vmem:[%s7 + $0x28] sm:$0xff]
  %582 = vmatprep.subr.mxu0 0.0
  %583 = vmatpush1.msra.mxu0 %v174
  %584 = vmatprep.subr.mxu0 0.0
  %585 = vmatpush1.msra.mxu0 %v175
  %586 = vmatprep.subr.mxu0 0.0
  %587 = vmatpush1.msra.mxu0 %v176
  %588 = vmatprep.subr.mxu0 0.0
  %589 = vmatpush1.msra.mxu0 %v177
  %590 = vmatprep.subr.mxu0 0.0
  %591 = vmatpush1.msra.mxu0 %v178
  %592 = vmatprep.subr.mxu0 0.0
  %593 = vmatpush1.msra.mxu0 %v179
  %594 = vmatprep.subr.mxu0 0.0
  %595 = vmatpush1.msra.mxu0 %v180
  %596 = vmatprep.subr.mxu0 0.0
  %597 = vmatpush1.msra.mxu0 %v181
  %598 = vmatprep.subr.mxu0 0.0
  %599 = vmatpush1.msra.mxu0 %v182
  %600 = vmatprep.subr.mxu0 0.0
  %601 = vmatpush1.msra.mxu0 %v183
  %602 = vmatprep.subr.mxu0 0.0
  %603 = vmatpush1.msra.mxu0 %v184
  %604 = vmatprep.subr.mxu0 0.0
  %605 = vmatpush1.msra.mxu0 %v185
  %606 = vmatprep.subr.mxu0 0.0
  %607 = vmatpush1.msra.mxu0 %v186
  %608 = vmatprep.subr.mxu0 0.0
  %609 = vmatpush1.msra.mxu0 %v187
  %610 = vmatprep.subr.mxu0 0.0
  %611 = vmatpush1.msra.mxu0 %v188
  %612 = vmatprep.subr.mxu0 0.0
  %613 = vmatpush1.msra.mxu0 %v189
  %614 = vmatprep.subr.mxu0 0.0
  %615 = vmatpush1.msra.mxu0 0.0
  %616 = vmatprep.subr.mxu0 0.0
  %617 = vmatpush1.msra.mxu0 0.0
  %618 = vmatprep.subr.mxu0 0.0
  %619 = vmatpush1.msra.mxu0 0.0
  %620 = vmatprep.subr.mxu0 0.0
  %621 = vmatpush1.msra.mxu0 0.0
  %622 = vmatprep.subr.mxu0 0.0
  %623 = vmatpush1.msra.mxu0 0.0
  %624 = vmatprep.subr.mxu0 0.0
  %625 = vmatpush1.msra.mxu0 0.0
  %626 = vmatprep.subr.mxu0 0.0
  %627 = vmatpush1.msra.mxu0 0.0
  %628 = vmatprep.subr.mxu0 0.0
  %629 = vmatpush1.msra.mxu0 0.0
  %630 = vmatprep.subr.mxu0 0.0
  %631 = vmatpush1.msra.mxu0 0.0
  %632 = vmatprep.subr.mxu0 0.0
  %633 = vmatpush1.msra.mxu0 0.0
  %634 = vmatprep.subr.mxu0 0.0
  %635 = vmatpush1.msra.mxu0 0.0
  %636 = vmatprep.subr.mxu0 0.0
  %637 = vmatpush1.msra.mxu0 0.0
  %638 = vmatprep.subr.mxu0 0.0
  %639 = vmatpush1.msra.mxu0 0.0
  %640 = vmatprep.subr.mxu0 0.0
  %641 = vmatpush1.msra.mxu0 0.0
  %642 = vmatprep.subr.mxu0 0.0
  %643 = vmatpush1.msra.mxu0 0.0
  %644 = vmatprep.subr.mxu0 0.0
  %645 = vmatpush1.msra.mxu0 0.0
  %646 = vmatprep.mubr.f32.mxu0 0.0
  %647 = vmatmul.mubr.f32.gmra.mrb[0].mxu0 %v579
  %v648 = vpop.f32.mrb[0].mxu0
  %v649 = vadd.f32 %v581, %v648
  %v650 = vpop.f32.mrb[0].mxu0
  %651 = vdwg.mxu0
  %v652 = vxor.u32 %v649, 2147483648
  %v653 = vmul.f32 %v652, 1.442695
  %v654 = vpow.pop %v653
  %v655 = vadd.f32 %v654, 1.0
  %v656 = vrcp.pop %v655
  %v657 = vmul.f32 1.0, %v656
  %658 = vst [vmem:[%s7 + $0x28] sm:$0xff] %v657
  %v659 = vld [vmem:[%s7 + $0x30] sm:$0xff]
  %660 = vmatprep.subr.mxu0 0.0
  %661 = vmatpush1.msra.mxu0 %v174
  %662 = vmatprep.subr.mxu0 0.0
  %663 = vmatpush1.msra.mxu0 %v175
  %664 = vmatprep.subr.mxu0 0.0
  %665 = vmatpush1.msra.mxu0 %v176
  %666 = vmatprep.subr.mxu0 0.0
  %667 = vmatpush1.msra.mxu0 %v177
  %668 = vmatprep.subr.mxu0 0.0
  %669 = vmatpush1.msra.mxu0 %v178
  %670 = vmatprep.subr.mxu0 0.0
  %671 = vmatpush1.msra.mxu0 %v179
  %672 = vmatprep.subr.mxu0 0.0
  %673 = vmatpush1.msra.mxu0 %v180
  %674 = vmatprep.subr.mxu0 0.0
  %675 = vmatpush1.msra.mxu0 %v181
  %676 = vmatprep.subr.mxu0 0.0
  %677 = vmatpush1.msra.mxu0 %v182
  %678 = vmatprep.subr.mxu0 0.0
  %679 = vmatpush1.msra.mxu0 %v183
  %680 = vmatprep.subr.mxu0 0.0
  %681 = vmatpush1.msra.mxu0 %v184
  %682 = vmatprep.subr.mxu0 0.0
  %683 = vmatpush1.msra.mxu0 %v185
  %684 = vmatprep.subr.mxu0 0.0
  %685 = vmatpush1.msra.mxu0 %v186
  %686 = vmatprep.subr.mxu0 0.0
  %687 = vmatpush1.msra.mxu0 %v187
  %688 = vmatprep.subr.mxu0 0.0
  %689 = vmatpush1.msra.mxu0 %v188
  %690 = vmatprep.subr.mxu0 0.0
  %691 = vmatpush1.msra.mxu0 %v189
  %692 = vmatprep.subr.mxu0 0.0
  %693 = vmatpush1.msra.mxu0 0.0
  %694 = vmatprep.subr.mxu0 0.0
  %695 = vmatpush1.msra.mxu0 0.0
  %696 = vmatprep.subr.mxu0 0.0
  %697 = vmatpush1.msra.mxu0 0.0
  %698 = vmatprep.subr.mxu0 0.0
  %699 = vmatpush1.msra.mxu0 0.0
  %700 = vmatprep.subr.mxu0 0.0
  %701 = vmatpush1.msra.mxu0 0.0
  %702 = vmatprep.subr.mxu0 0.0
  %703 = vmatpush1.msra.mxu0 0.0
  %704 = vmatprep.subr.mxu0 0.0
  %705 = vmatpush1.msra.mxu0 0.0
  %706 = vmatprep.subr.mxu0 0.0
  %707 = vmatpush1.msra.mxu0 0.0
  %708 = vmatprep.subr.mxu0 0.0
  %709 = vmatpush1.msra.mxu0 0.0
  %710 = vmatprep.subr.mxu0 0.0
  %711 = vmatpush1.msra.mxu0 0.0
  %712 = vmatprep.subr.mxu0 0.0
  %713 = vmatpush1.msra.mxu0 0.0
  %714 = vmatprep.subr.mxu0 0.0
  %715 = vmatpush1.msra.mxu0 0.0
  %716 = vmatprep.subr.mxu0 0.0
  %717 = vmatpush1.msra.mxu0 0.0
  %718 = vmatprep.subr.mxu0 0.0
  %719 = vmatpush1.msra.mxu0 0.0
  %720 = vmatprep.subr.mxu0 0.0
  %721 = vmatpush1.msra.mxu0 0.0
  %722 = vmatprep.subr.mxu0 0.0
  %723 = vmatpush1.msra.mxu0 0.0
  %724 = vmatprep.mubr.f32.mxu0 0.0
  %725 = vmatmul.mubr.f32.gmra.mrb[0].mxu0 %v657
  %v726 = vpop.f32.mrb[0].mxu0
  %v727 = vadd.f32 %v659, %v726
  %v728 = vpop.f32.mrb[0].mxu0
  %729 = vdwg.mxu0
  %v730 = vxor.u32 %v727, 2147483648
  %v731 = vmul.f32 %v730, 1.442695
  %v732 = vpow.pop %v731
  %v733 = vadd.f32 %v732, 1.0
  %v734 = vrcp.pop %v733
  %v735 = vmul.f32 1.0, %v734
  %736 = vst [vmem:[%s7 + $0x30] sm:$0xff] %v735
  %v737 = vld [vmem:[%s7 + $0x38] sm:$0xff]
  %738 = vmatprep.subr.mxu0 0.0
  %739 = vmatpush1.msra.mxu0 %v174
  %740 = vmatprep.subr.mxu0 0.0
  %741 = vmatpush1.msra.mxu0 %v175
  %742 = vmatprep.subr.mxu0 0.0
  %743 = vmatpush1.msra.mxu0 %v176
  %744 = vmatprep.subr.mxu0 0.0
  %745 = vmatpush1.msra.mxu0 %v177
  %746 = vmatprep.subr.mxu0 0.0
  %747 = vmatpush1.msra.mxu0 %v178
  %748 = vmatprep.subr.mxu0 0.0
  %749 = vmatpush1.msra.mxu0 %v179
  %750 = vmatprep.subr.mxu0 0.0
  %751 = vmatpush1.msra.mxu0 %v180
  %752 = vmatprep.subr.mxu0 0.0
  %753 = vmatpush1.msra.mxu0 %v181
  %754 = vmatprep.subr.mxu0 0.0
  %755 = vmatpush1.msra.mxu0 %v182
  %756 = vmatprep.subr.mxu0 0.0
  %757 = vmatpush1.msra.mxu0 %v183
  %758 = vmatprep.subr.mxu0 0.0
  %759 = vmatpush1.msra.mxu0 %v184
  %760 = vmatprep.subr.mxu0 0.0
  %761 = vmatpush1.msra.mxu0 %v185
  %762 = vmatprep.subr.mxu0 0.0
  %763 = vmatpush1.msra.mxu0 %v186
  %764 = vmatprep.subr.mxu0 0.0
  %765 = vmatpush1.msra.mxu0 %v187
  %766 = vmatprep.subr.mxu0 0.0
  %767 = vmatpush1.msra.mxu0 %v188
  %768 = vmatprep.subr.mxu0 0.0
  %769 = vmatpush1.msra.mxu0 %v189
  %770 = vmatprep.subr.mxu0 0.0
  %771 = vmatpush1.msra.mxu0 0.0
  %772 = vmatprep.subr.mxu0 0.0
  %773 = vmatpush1.msra.mxu0 0.0
  %774 = vmatprep.subr.mxu0 0.0
  %775 = vmatpush1.msra.mxu0 0.0
  %776 = vmatprep.subr.mxu0 0.0
  %777 = vmatpush1.msra.mxu0 0.0
  %778 = vmatprep.subr.mxu0 0.0
  %779 = vmatpush1.msra.mxu0 0.0
  %780 = vmatprep.subr.mxu0 0.0
  %781 = vmatpush1.msra.mxu0 0.0
  %782 = vmatprep.subr.mxu0 0.0
  %783 = vmatpush1.msra.mxu0 0.0
  %784 = vmatprep.subr.mxu0 0.0
  %785 = vmatpush1.msra.mxu0 0.0
  %786 = vmatprep.subr.mxu0 0.0
  %787 = vmatpush1.msra.mxu0 0.0
  %788 = vmatprep.subr.mxu0 0.0
  %789 = vmatpush1.msra.mxu0 0.0
  %790 = vmatprep.subr.mxu0 0.0
  %791 = vmatpush1.msra.mxu0 0.0
  %792 = vmatprep.subr.mxu0 0.0
  %793 = vmatpush1.msra.mxu0 0.0
  %794 = vmatprep.subr.mxu0 0.0
  %795 = vmatpush1.msra.mxu0 0.0
  %796 = vmatprep.subr.mxu0 0.0
  %797 = vmatpush1.msra.mxu0 0.0
  %798 = vmatprep.subr.mxu0 0.0
  %799 = vmatpush1.msra.mxu0 0.0
  %800 = vmatprep.subr.mxu0 0.0
  %801 = vmatpush1.msra.mxu0 0.0
  %802 = vmatprep.mubr.f32.mxu0 0.0
  %803 = vmatmul.mubr.f32.gmra.mrb[0].mxu0 %v735
  %v804 = vpop.f32.mrb[0].mxu0
  %v805 = vadd.f32 %v737, %v804
  %v806 = vpop.f32.mrb[0].mxu0
  %807 = vdwg.mxu0
  %v808 = vxor.u32 %v805, 2147483648
  %v809 = vmul.f32 %v808, 1.442695
  %v810 = vpow.pop %v809
  %v811 = vadd.f32 %v810, 1.0
  %v812 = vrcp.pop %v811
  %v813 = vmul.f32 1.0, %v812
  %814 = vst [vmem:[%s7 + $0x38] sm:$0xff] %v813
  %815 = vst [vmem:[#allocation2] sm:$0xff] %v813
  %v816 = vld [vmem:[%s7] sm:$0xff]
  %v817 = vld [vmem:[%s7 + $0x8] sm:$0xff]
  %v818 = vld [vmem:[%s7 + $0x10] sm:$0xff]
  %v819 = vld [vmem:[%s7 + $0x18] sm:$0xff]
  %v820 = vld [vmem:[%s7 + $0x20] sm:$0xff]
  %v821 = vld [vmem:[%s7 + $0x28] sm:$0xff]
  %v822 = vld [vmem:[%s7 + $0x30] sm:$0xff]
  %v823 = vld [vmem:[%s7 + $0x38] sm:$0xff]
  %v824 = vld [vmem:[%s4] sm:$0xff]
  %v825 = vld [vmem:[%s4 + $0x8] sm:$0xff]
  %v826 = vld [vmem:[%s4 + $0x10] sm:$0xff]
  %v827 = vld [vmem:[%s4 + $0x18] sm:$0xff]
  %v828 = vld [vmem:[%s4 + $0x20] sm:$0xff]
  %v829 = vld [vmem:[%s4 + $0x28] sm:$0xff]
  %v830 = vld [vmem:[%s4 + $0x30] sm:$0xff]
  %v831 = vld [vmem:[%s4 + $0x38] sm:$0xff]
  %v832 = vld [vmem:[%s4 + $0x40] sm:$0xff]
  %v833 = vld [vmem:[%s4 + $0x48] sm:$0xff]
  %v834 = vld [vmem:[%s4 + $0x50] sm:$0xff]
  %v835 = vld [vmem:[%s4 + $0x58] sm:$0xff]
  %v836 = vld [vmem:[%s4 + $0x60] sm:$0xff]
  %v837 = vld [vmem:[%s4 + $0x68] sm:$0xff]
  %v838 = vld [vmem:[%s4 + $0x70] sm:$0xff]
  %v839 = vld [vmem:[%s4 + $0x78] sm:$0xff]
  %v840 = vld [vmem:[%s5] sm:$0x1]
  %v842 = vlaneseq
  %v843 = vshrl.u32 %v842, 7
  %v844 = vsub.s32 0, %v843
  %v845 = vrot.slane %v840, %v844
  %847 = vmatprep.subr.mxu0 0.0
  %848 = vmatpush1.msra.mxu0 %v824
  %849 = vmatprep.subr.mxu0 0.0
  %850 = vmatpush1.msra.mxu0 %v825
  %851 = vmatprep.subr.mxu0 0.0
  %852 = vmatpush1.msra.mxu0 %v826
  %853 = vmatprep.subr.mxu0 0.0
  %854 = vmatpush1.msra.mxu0 %v827
  %855 = vmatprep.subr.mxu0 0.0
  %856 = vmatpush1.msra.mxu0 %v828
  %857 = vmatprep.subr.mxu0 0.0
  %858 = vmatpush1.msra.mxu0 %v829
  %859 = vmatprep.subr.mxu0 0.0
  %860 = vmatpush1.msra.mxu0 %v830
  %861 = vmatprep.subr.mxu0 0.0
  %862 = vmatpush1.msra.mxu0 %v831
  %863 = vmatprep.subr.mxu0 0.0
  %864 = vmatpush1.msra.mxu0 %v832
  %865 = vmatprep.subr.mxu0 0.0
  %866 = vmatpush1.msra.mxu0 %v833
  %867 = vmatprep.subr.mxu0 0.0
  %868 = vmatpush1.msra.mxu0 %v834
  %869 = vmatprep.subr.mxu0 0.0
  %870 = vmatpush1.msra.mxu0 %v835
  %871 = vmatprep.subr.mxu0 0.0
  %872 = vmatpush1.msra.mxu0 %v836
  %873 = vmatprep.subr.mxu0 0.0
  %874 = vmatpush1.msra.mxu0 %v837
  %875 = vmatprep.subr.mxu0 0.0
  %876 = vmatpush1.msra.mxu0 %v838
  %877 = vmatprep.subr.mxu0 0.0
  %878 = vmatpush1.msra.mxu0 %v839
  %879 = vmatprep.subr.mxu0 0.0
  %880 = vmatpush1.msra.mxu0 0.0
  %881 = vmatprep.subr.mxu0 0.0
  %882 = vmatpush1.msra.mxu0 0.0
  %883 = vmatprep.subr.mxu0 0.0
  %884 = vmatpush1.msra.mxu0 0.0
  %885 = vmatprep.subr.mxu0 0.0
  %886 = vmatpush1.msra.mxu0 0.0
  %887 = vmatprep.subr.mxu0 0.0
  %888 = vmatpush1.msra.mxu0 0.0
  %889 = vmatprep.subr.mxu0 0.0
  %890 = vmatpush1.msra.mxu0 0.0
  %891 = vmatprep.subr.mxu0 0.0
  %892 = vmatpush1.msra.mxu0 0.0
  %893 = vmatprep.subr.mxu0 0.0
  %894 = vmatpush1.msra.mxu0 0.0
  %895 = vmatprep.subr.mxu0 0.0
  %896 = vmatpush1.msra.mxu0 0.0
  %897 = vmatprep.subr.mxu0 0.0
  %898 = vmatpush1.msra.mxu0 0.0
  %899 = vmatprep.subr.mxu0 0.0
  %900 = vmatpush1.msra.mxu0 0.0
  %901 = vmatprep.subr.mxu0 0.0
  %902 = vmatpush1.msra.mxu0 0.0
  %903 = vmatprep.subr.mxu0 0.0
  %904 = vmatpush1.msra.mxu0 0.0
  %905 = vmatprep.subr.mxu0 0.0
  %906 = vmatpush1.msra.mxu0 0.0
  %907 = vmatprep.subr.mxu0 0.0
  %908 = vmatpush1.msra.mxu0 0.0
  %909 = vmatprep.subr.mxu0 0.0
  %910 = vmatpush1.msra.mxu0 0.0
  %911 = vmatprep.mubr.f32.mxu0 0.0
  %912 = vmatmul.mubr.f32.gmra.mrb[0].mxu0 %v816
  %v913 = vpop.f32.mrb[0].mxu0
  %v914 = vadd.f32 %v845, %v913
  %v915 = vpop.f32.mrb[0].mxu0
  %916 = vmatprep.mubr.f32.mxu0 0.0
  %917 = vmatmul.mubr.f32.gmra.mrb[0].mxu0 %v817
  %v918 = vpop.f32.mrb[0].mxu0
  %v919 = vadd.f32 %v845, %v918
  %v920 = vpop.f32.mrb[0].mxu0
  %921 = vmatprep.mubr.f32.mxu0 0.0
  %922 = vmatmul.mubr.f32.gmra.mrb[0].mxu0 %v818
  %v923 = vpop.f32.mrb[0].mxu0
  %v924 = vadd.f32 %v845, %v923
  %v925 = vpop.f32.mrb[0].mxu0
  %926 = vmatprep.mubr.f32.mxu0 0.0
  %927 = vmatmul.mubr.f32.gmra.mrb[0].mxu0 %v819
  %v928 = vpop.f32.mrb[0].mxu0
  %v929 = vadd.f32 %v845, %v928
  %v930 = vpop.f32.mrb[0].mxu0
  %931 = vmatprep.mubr.f32.mxu0 0.0
  %932 = vmatmul.mubr.f32.gmra.mrb[0].mxu0 %v820
  %v933 = vpop.f32.mrb[0].mxu0
  %v934 = vadd.f32 %v845, %v933
  %v935 = vpop.f32.mrb[0].mxu0
  %936 = vmatprep.mubr.f32.mxu0 0.0
  %937 = vmatmul.mubr.f32.gmra.mrb[0].mxu0 %v821
  %v938 = vpop.f32.mrb[0].mxu0
  %v939 = vadd.f32 %v845, %v938
  %v940 = vpop.f32.mrb[0].mxu0
  %941 = vmatprep.mubr.f32.mxu0 0.0
  %942 = vmatmul.mubr.f32.gmra.mrb[0].mxu0 %v822
  %v943 = vpop.f32.mrb[0].mxu0
  %v944 = vadd.f32 %v845, %v943
  %v945 = vpop.f32.mrb[0].mxu0
  %946 = vmatprep.mubr.f32.mxu0 0.0
  %947 = vmatmul.mubr.f32.gmra.mrb[0].mxu0 %v823
  %v948 = vpop.f32.mrb[0].mxu0
  %v949 = vadd.f32 %v845, %v948
  %v950 = vpop.f32.mrb[0].mxu0
  %951 = vdwg.mxu0
  %952 = vst [vmem:[%s6] sm:$0xff] %v914
  %953 = vst [vmem:[%s6 + $0x8] sm:$0xff] %v919
  %954 = vst [vmem:[%s6 + $0x10] sm:$0xff] %v924
  %955 = vst [vmem:[%s6 + $0x18] sm:$0xff] %v929
  %956 = vst [vmem:[%s6 + $0x20] sm:$0xff] %v934
  %957 = vst [vmem:[%s6 + $0x28] sm:$0xff] %v939
  %958 = vst [vmem:[%s6 + $0x30] sm:$0xff] %v944
  %959 = vst [vmem:[%s6 + $0x38] sm:$0xff] %v949
  // Predicated region
  $region30: #{rnn_net_forward.1} parent=0 // pred_check
    _
  $region31: #{rnn_net_forward.1} parent=0 // pred_check_branch
    %961 = sbr.rel (0) target = $region33
  $region32: #{rnn_net_forward.1} parent=0 // pred_region
    _
  $region33: #{rnn_net_forward.1} parent=0 // pred_fallthru
    _
  // Predicated region
  $region34: #{rnn_net_forward.1} parent=0 // pred_check
    _
  $region35: #{rnn_net_forward.1} parent=0 // pred_check_branch
    %963 = sbr.rel (0) target = $region37
  $region36: #{rnn_net_forward.1} parent=0 // pred_region
    _
  $region37: #{rnn_net_forward.1} parent=0 // pred_fallthru
    _
  // Predicated region
  $region38: #{rnn_net_forward.1} parent=0 // pred_check
    _
  $region39: #{rnn_net_forward.1} parent=0 // pred_check_branch
    %965 = sbr.rel (0) target = $region41
  $region40: #{rnn_net_forward.1} parent=0 // pred_region
    _
  $region41: #{rnn_net_forward.1} parent=0 // pred_fallthru
    _
  // Predicated region
  $region42: #{rnn_net_forward.1} parent=0 // pred_check
    _
  $region43: #{rnn_net_forward.1} parent=0 // pred_check_branch
    %967 = sbr.rel (0) target = $region45
  $region44: #{rnn_net_forward.1} parent=0 // pred_region
    _
  $region45: #{rnn_net_forward.1} parent=0 // pred_fallthru
    _

</llo_original>
